<compile_context>
chip_gen: v7x
topology: tpu7x:2x2x1
jax: 0.10.0
libtpu: 0.0.40
codegen_flags: <defaults>
</compile_context>

<pallas_src>
import numpy as np
import jax
import jax.numpy as jnp
from jax import lax
from jax.experimental import pallas as pl
from jax.experimental.pallas import tpu as pltpu


# --------------------------- Kernel 1: recurrence --------------------------- #

def _lstm_recurrence_kernel(fc_ref, w_img_ref, b_img_ref, w_ih_ref, xg_ref,
                            w_hh_ref, h_out_ref):
    # fc_ref   : (B, F)          f32   image features
    # w_img_ref: (F, E)          bf16  img_embed weight (pre-transposed)
    # b_img_ref: (1, E)          f32
    # w_ih_ref : (E, 4H)         bf16  W_ih^T, i/f/o columns pre-scaled by 0.5
    # xg_ref   : (T_out, B, 4H)  f32   embed(seq[:,t-1]) @ W_ih^T (pre-scaled)
    # w_hh_ref : (H, 4H)         bf16  W_hh^T, i/f/o columns pre-scaled by 0.5
    # h_out_ref: (T_out, B, H)   f32   hidden states for t = 1 .. T_eff-1
    B = fc_ref.shape[0]
    H = w_hh_ref.shape[0]
    T_out = xg_ref.shape[0]

    # Hoisted loop invariants (JAX does not CSE broadcast_in_dim).
    lane = lax.broadcasted_iota(jnp.int32, (B, 4 * H), dimension=1)
    g_mask = (lane >= 2 * H) & (lane < 3 * H)      # tanh lanes (g gate)
    w_hh = w_hh_ref[...]                           # (H, 4H) bf16, resident

    def cell(gates, c):
        # gates already carry the 0.5 pre-scale on i/f/o lanes, so
        #   sigmoid(x) == 0.5*tanh(x/2) + 0.5  -> ONE EUP tanh pass + VPU affine.
        t = jnp.tanh(gates)                                        # (B, 4H)
        act = jnp.where(g_mask, t, 0.5 * t + 0.5)
        i_g = act[:, 0 * H:1 * H]
        f_g = act[:, 1 * H:2 * H]
        g_g = act[:, 2 * H:3 * H]
        o_g = act[:, 3 * H:4 * H]
        c_new = f_g * c + i_g * g_g
        h_new = o_g * jnp.tanh(c_new)
        return h_new, c_new

    # ---- t = 0 : xt = img_embed(fc_feats); h = c = 0, so gates = xt @ W_ih. --
    xt0 = (jnp.dot(fc_ref[...].astype(jnp.bfloat16), w_img_ref[...],
                   preferred_element_type=jnp.float32) + b_img_ref[...])  # (B,E)
    g0 = jnp.dot(xt0.astype(jnp.bfloat16), w_ih_ref[...],
                 preferred_element_type=jnp.float32)                      # (B,4H)
    h, c = cell(g0, jnp.zeros((B, H), jnp.float32))

    # ---- t = 1 .. T_eff-1 : only the recurrent matmul is on the chain. ------
    def body(j, carry):                      # j = t - 1
        h, c = carry
        gates = xg_ref[j] + jnp.dot(h.astype(jnp.bfloat16), w_hh,
                                    preferred_element_type=jnp.float32)
        h, c = cell(gates, c)
        h_out_ref[j] = h
        return h, c

    lax.fori_loop(0, T_out, body, (h, c), unroll=True)


def lstm_recurrence(fc, w_img_t, b_img, w_ih_ts, xg, w_hh_ts):
    B, F = fc.shape
    E = w_img_t.shape[1]
    H = w_hh_ts.shape[0]
    T_out = xg.shape[0]
    return pl.pallas_call(
        _lstm_recurrence_kernel,
        out_shape=jax.ShapeDtypeStruct((T_out, B, H), jnp.float32),
        grid=(1,),
        in_specs=[pl.BlockSpec((B, F), lambda i: (0, 0)),
                  pl.BlockSpec((F, E), lambda i: (0, 0)),
                  pl.BlockSpec((1, E), lambda i: (0, 0)),
                  pl.BlockSpec((E, 4 * H), lambda i: (0, 0)),
                  pl.BlockSpec((T_out, B, 4 * H), lambda i: (0, 0, 0)),
                  pl.BlockSpec((H, 4 * H), lambda i: (0, 0))],
        out_specs=pl.BlockSpec((T_out, B, H), lambda i: (0, 0, 0)),
        compiler_params=pltpu.CompilerParams(
            dimension_semantics=("arbitrary",),
            vmem_limit_bytes=48 * 1024 * 1024),
    )(fc, w_img_t, b_img, w_ih_ts, xg, w_hh_ts)


# ---------------------- Kernel 2: batched logit + lsm ----------------------- #

def _logit_logsoftmax_kernel(h_ref, w_log_ref, b_log_ref, out_ref):
    # h_ref    : (row_tile, H)    f32  batch-major rows of hidden states
    # w_log_ref: (H, V1p)         bf16 logit weight (pre-transposed, V1 padded)
    # b_log_ref: (1, V1p)         f32  (padded lanes = -1e30)
    # out_ref  : (row_tile, V1p)  f32  log-probs
    logits = (jnp.dot(h_ref[...].astype(jnp.bfloat16), w_log_ref[...],
                      preferred_element_type=jnp.float32) + b_log_ref[...])
    z = logits - jnp.max(logits, axis=-1, keepdims=True)
    out_ref[...] = z - jnp.log(jnp.sum(jnp.exp(z), axis=-1, keepdims=True))


def logit_logsoftmax(h2d, w_log_tp, b_log_p, row_tile):
    rows, H = h2d.shape
    V1p = w_log_tp.shape[1]
    return pl.pallas_call(
        _logit_logsoftmax_kernel,
        out_shape=jax.ShapeDtypeStruct((rows, V1p), jnp.float32),
        grid=(pl.cdiv(rows, row_tile),),
        in_specs=[pl.BlockSpec((row_tile, H), lambda i: (i, 0)),
                  pl.BlockSpec((H, V1p), lambda i: (0, 0)),
                  pl.BlockSpec((1, V1p), lambda i: (0, 0))],
        out_specs=pl.BlockSpec((row_tile, V1p), lambda i: (i, 0)),
        compiler_params=pltpu.CompilerParams(
            dimension_semantics=("parallel",),          # megacore on v7x
            vmem_limit_bytes=48 * 1024 * 1024),
    )(h2d, w_log_tp, b_log_p)


# ------------------------------- model glue -------------------------------- #

class FCModelPallas:
    """JAX/Pallas re-implementation of FCModel.forward (teacher-forcing path)."""

    def __init__(self, key, fc_feat_size, embedding_size, rnn_size, vocab_size):
        self.F, self.E, self.H = fc_feat_size, embedding_size, rnn_size
        self.V1 = vocab_size + 1
        k = jax.random.split(key, 6)
        initrange = 0.1
        # img_embed: Linear(F, E) (PyTorch-style uniform init)
        bnd = 1.0 / np.sqrt(self.F)
        W_img = jax.random.uniform(k[0], (self.E, self.F), jnp.float32, -bnd, bnd)
        b_img = jax.random.uniform(k[1], (self.E,), jnp.float32, -bnd, bnd)
        # core: LSTM(E, H, num_layers=1, bias=False), gate order i, f, g, o
        bnd = 1.0 / np.sqrt(self.H)
        w_ih = jax.random.uniform(k[2], (4 * self.H, self.E), jnp.float32, -bnd, bnd)
        w_hh = jax.random.uniform(k[3], (4 * self.H, self.H), jnp.float32, -bnd, bnd)
        # embed: Embedding(V+1, E), uniform(-0.1, 0.1)
        self.embed_w = jax.random.uniform(k[4], (self.V1, self.E), jnp.float32,
                                          -initrange, initrange)
        # logit: Linear(H, V+1), weight uniform(-0.1, 0.1), bias 0
        W_log = jax.random.uniform(k[5], (self.V1, self.H), jnp.float32,
                                   -initrange, initrange)
        b_log = jnp.zeros((self.V1,), jnp.float32)

        # Raw fp32 params kept for the reference check.
        self._w_ih, self._w_hh = w_ih, w_hh

        # ---- hoisted, pre-transposed / pre-scaled MXU operands -------------
        # 0.5 pre-scale on i/f/o gate columns (exact power-of-2 scale) so the
        # kernel needs a single tanh pass: sigmoid(x) = 0.5*tanh(x/2) + 0.5.
        s = jnp.concatenate([jnp.full((2 * self.H,), 0.5, jnp.float32),   # i, f
                             jnp.ones((self.H,), jnp.float32),            # g
                             jnp.full((self.H,), 0.5, jnp.float32)])      # o
        self.W_img_t = W_img.T.astype(jnp.bfloat16)                  # (F, E)
        self.b_img = b_img.reshape(1, self.E)                        # (1, E)
        self.W_ih_Ts = (w_ih.T * s).astype(jnp.bfloat16)             # (E, 4H)
        self.W_hh_Ts = (w_hh.T * s).astype(jnp.bfloat16)             # (H, 4H)
        # Embedding folded through W_ih^T (f32): gather seq directly in gate
        # space -> no per-step input-side matmul, no emb DMA, no concat.
        self.emb_gate = self.embed_w @ (w_ih.T * s)                  # (V1, 4H)

        # Logit operands (unpadded for reference, V1 padded to x128 for kernel).
        self.W_log_t = W_log.T.astype(jnp.bfloat16)                  # (H, V1)
        self.b_log = b_log.reshape(1, self.V1)                       # (1, V1)
        self.V1p = ((self.V1 + 127) // 128) * 128
        if self.V1p != self.V1:
            pad = self.V1p - self.V1
            self.W_log_tp = jnp.pad(self.W_log_t, ((0, 0), (0, pad)))
            self.b_log_p = jnp.pad(self.b_log, ((0, 0), (0, pad)),
                                   constant_values=-1e30)
        else:
            self.W_log_tp = self.W_log_t
            self.b_log_p = self.b_log

    def forward(self, fc_feats, att_feats, seq):
        del att_feats  # unused in the FC model forward
        if fc_feats.ndim == 3:
            fc_feats = jnp.squeeze(fc_feats, axis=1)
        B = fc_feats.shape[0]
        T = seq.shape[1]

        # Host-side resolution of the data-dependent early break (mirrors the
        # Python-level `break` in the torch loop; requires concrete `seq`).
        seq_np = np.asarray(seq)
        T_eff = T
        for i in range(1, T):
            if i >= 2 and int(seq_np[:, i - 1].sum()) == 0:
                T_eff = i
                break
        T_out = T_eff - 1            # >= 1 (break can only trigger at i >= 2)

        # Gather tokens directly in (pre-scaled) gate space, time-major.
        seq_t = jnp.transpose(seq)[:T_out].astype(jnp.int32)        # (T_out, B)
        xg = self.emb_gate[seq_t]                                   # (T_out,B,4H)

        # Phase 1: serial LSTM recurrence -> hidden states only.
        h_all = lstm_recurrence(fc_feats, self.W_img_t, self.b_img,
                                self.W_ih_Ts, xg, self.W_hh_Ts)     # (T_out,B,H)

        # Phase 2: batched logit + log_softmax, batch-major rows so the big
        # V1-wide output comes out (B, T_out, V1) with no wrapper transpose
        # (only the tiny H-wide tensor is transposed; reshape is free).
        h2d = jnp.transpose(h_all, (1, 0, 2)).reshape(B * T_out, self.H)
        rows = B * T_out
        row_tile = 128 if rows >= 128 else (8 if rows >= 8 else rows)
        lp = logit_logsoftmax(h2d, self.W_log_tp, self.b_log_p, row_tile)
        if self.V1p != self.V1:
            lp = lp[:, :self.V1]
        return lp.reshape(B, T_out, self.V1)                        # (B,T_out,V1)


# --------------------------- pure-JAX reference ----------------------------- #

def _reference_forward(model, fc_feats, seq):
    """Non-Pallas mirror: standard sigmoid/tanh LSTM with the same bf16
    operand casts and the same f32 embedding->gate fold (no 0.5 trick)."""
    fc = jnp.squeeze(fc_feats, axis=1)
    B = fc.shape[0]
    T = seq.shape[1]
    H = model.H
    w_ih_t = model._w_ih.T.astype(jnp.bfloat16)        # unscaled
    w_hh_t = model._w_hh.T.astype(jnp.bfloat16)        # unscaled
    emb_gate_u = model.embed_w @ model._w_ih.T         # (V1, 4H) f32, unscaled
    h = jnp.zeros((B, H), jnp.float32)
    c = jnp.zeros((B, H), jnp.float32)
    outs = []
    for t in range(T):
        if t == 0:
            xt0 = (jnp.dot(fc.astype(jnp.bfloat16), model.W_img_t,
                           preferred_element_type=jnp.float32) + model.b_img)
            xg = jnp.dot(xt0.astype(jnp.bfloat16), w_ih_t,
                         preferred_element_type=jnp.float32)
        else:
            xg = emb_gate_u[seq[:, t - 1]]
        gates = xg + jnp.dot(h.astype(jnp.bfloat16), w_hh_t,
                             preferred_element_type=jnp.float32)
        i_g = jax.nn.sigmoid(gates[:, 0 * H:1 * H])
        f_g = jax.nn.sigmoid(gates[:, 1 * H:2 * H])
        g_g = jnp.tanh(gates[:, 2 * H:3 * H])
        o_g = jax.nn.sigmoid(gates[:, 3 * H:4 * H])
        c = f_g * c + i_g * g_g
        h = o_g * jnp.tanh(c)
        logits = (jnp.dot(h.astype(jnp.bfloat16), model.W_log_t,
                          preferred_element_type=jnp.float32) + model.b_log)
        z = logits - jnp.max(logits, axis=-1, keepdims=True)
        outs.append(z - jnp.log(jnp.sum(jnp.exp(z), axis=-1, keepdims=True)))
    return jnp.stack(outs[1:], axis=1)


# ---------------------------------- main ----------------------------------- #

if __name__ == "__main__":
    key = jax.random.PRNGKey(0)
    k_model, k_fc, k_seq = jax.random.split(key, 3)

    B = 2            # batch
    FC = 64          # opt.fc_feat_size
    E = 32           # opt.embedding_size
    H = 32           # opt.rnn_size
    V = 127          # opt.vocab_size  -> logit dim V+1 = 128
    T = 8            # seq length fed to forward()

    model = FCModelPallas(k_model, FC, E, H, V)

    fc_feats = jax.random.normal(k_fc, (B, 1, FC), jnp.float32)
    att_feats = jnp.zeros((B, 1, 1), jnp.float32)                  # unused
    seq = jax.random.randint(k_seq, (B, T), 1, V + 1, jnp.int32)   # nonzero tokens

    out = jax.block_until_ready(model.forward(fc_feats, att_feats, seq))

    assert out.shape == (B, T - 1, V + 1), out.shape
    # log_softmax sanity: rows sum to 1 in prob space.
    assert np.allclose(np.exp(np.asarray(out)).sum(-1), 1.0, atol=1e-4)
    # Numerics vs. pure-JAX reference (standard sigmoid/tanh, same bf16 casts).
    ref = jax.block_until_ready(_reference_forward(model, fc_feats, seq))
    err = float(np.abs(np.asarray(out) - np.asarray(ref)).max())
    assert np.allclose(np.asarray(out), np.asarray(ref), atol=1e-2, rtol=1e-2), err
    print("KERNEL_OK")
</pallas_src>

<mosaic_0001>
module attributes {stable_mosaic.version = 11 : i64} {
  func.func @_lstm_recurrence_kernel(%arg0: i32, %arg1: memref<2x64xf32, #tpu.memory_space<vmem>>, %arg2: memref<64x32xbf16, #tpu.memory_space<vmem>>, %arg3: memref<1x32xf32, #tpu.memory_space<vmem>>, %arg4: memref<32x128xbf16, #tpu.memory_space<vmem>>, %arg5: memref<7x2x128xf32, #tpu.memory_space<vmem>>, %arg6: memref<32x128xbf16, #tpu.memory_space<vmem>>, %arg7: memref<7x2x32xf32, #tpu.memory_space<vmem>>) attributes {dimension_semantics = [#tpu.dimension_semantics<arbitrary>], iteration_bounds = array<i64: 1>, scalar_prefetch = 0 : i64, scratch_operands = 0 : i64, tpu.core_type = #tpu.core_type<tc>, window_params = [{pipeline_mode = #tpu.pipeline_mode<synchronous>, transform_indices = @transform_0, window_bounds = array<i64: 2, 64>}, {pipeline_mode = #tpu.pipeline_mode<synchronous>, transform_indices = @transform_1, window_bounds = array<i64: 64, 32>}, {pipeline_mode = #tpu.pipeline_mode<synchronous>, transform_indices = @transform_2, window_bounds = array<i64: 1, 32>}, {pipeline_mode = #tpu.pipeline_mode<synchronous>, transform_indices = @transform_3, window_bounds = array<i64: 32, 128>}, {pipeline_mode = #tpu.pipeline_mode<synchronous>, transform_indices = @transform_4, window_bounds = array<i64: 7, 2, 128>}, {pipeline_mode = #tpu.pipeline_mode<synchronous>, transform_indices = @transform_5, window_bounds = array<i64: 32, 128>}, {pipeline_mode = #tpu.pipeline_mode<synchronous>, transform_indices = @transform_6, window_bounds = array<i64: 7, 2, 32>}]} {
    %0 = tpu.iota {dimensions = array<i32: 1>} : vector<2x128xi32>
    %c64_i32 = arith.constant 64 : i32
    %1 = vector.broadcast %c64_i32 : i32 to vector<2x128xi32>
    %2 = arith.cmpi sge, %0, %1 : vector<2x128xi32>
    %c96_i32 = arith.constant 96 : i32
    %3 = vector.broadcast %c96_i32 : i32 to vector<2x128xi32>
    %4 = arith.cmpi slt, %0, %3 : vector<2x128xi32>
    %5 = arith.andi %2, %4 : vector<2x128xi1>
    %c0 = arith.constant 0 : index
    %c0_0 = arith.constant 0 : index
    %6 = vector.load %arg6[%c0, %c0_0] : memref<32x128xbf16, #tpu.memory_space<vmem>>, vector<32x128xbf16>
    %c0_1 = arith.constant 0 : index
    %c0_2 = arith.constant 0 : index
    %7 = vector.load %arg1[%c0_1, %c0_2] : memref<2x64xf32, #tpu.memory_space<vmem>>, vector<2x64xf32>
    %8 = arith.truncf %7 : vector<2x64xf32> to vector<2x64xbf16>
    %c0_3 = arith.constant 0 : index
    %c0_4 = arith.constant 0 : index
    %9 = vector.load %arg2[%c0_3, %c0_4] : memref<64x32xbf16, #tpu.memory_space<vmem>>, vector<64x32xbf16>
    %cst = arith.constant dense<0.000000e+00> : vector<2x32xf32>
    %10 = tpu.matmul %8, %9, %cst {dimension_numbers = #tpu.dot_dimension_numbers<[1], [0], [0], [1], [0, 0, 1, 1], [], []>} : vector<2x64xbf16>, vector<64x32xbf16>, vector<2x32xf32> -> vector<2x32xf32>
    %c0_5 = arith.constant 0 : index
    %c0_6 = arith.constant 0 : index
    %11 = vector.load %arg3[%c0_5, %c0_6] : memref<1x32xf32, #tpu.memory_space<vmem>>, vector<1x32xf32>
    %12 = vector.broadcast %11 : vector<1x32xf32> to vector<2x32xf32>
    %13 = arith.addf %10, %12 : vector<2x32xf32>
    %14 = arith.truncf %13 : vector<2x32xf32> to vector<2x32xbf16>
    %c0_7 = arith.constant 0 : index
    %c0_8 = arith.constant 0 : index
    %15 = vector.load %arg4[%c0_7, %c0_8] : memref<32x128xbf16, #tpu.memory_space<vmem>>, vector<32x128xbf16>
    %cst_9 = arith.constant dense<0.000000e+00> : vector<2x128xf32>
    %16 = tpu.matmul %14, %15, %cst_9 {dimension_numbers = #tpu.dot_dimension_numbers<[1], [0], [0], [1], [0, 0, 1, 1], [], []>} : vector<2x32xbf16>, vector<32x128xbf16>, vector<2x128xf32> -> vector<2x128xf32>
    %cst_10 = arith.constant 0.000000e+00 : f32
    %17 = vector.broadcast %cst_10 : f32 to vector<2x32xf32>
    %18 = math.tanh %16 : vector<2x128xf32>
    %cst_11 = arith.constant 5.000000e-01 : f32
    %19 = vector.broadcast %cst_11 : f32 to vector<2x128xf32>
    %20 = arith.mulf %19, %18 : vector<2x128xf32>
    %cst_12 = arith.constant 5.000000e-01 : f32
    %21 = vector.broadcast %cst_12 : f32 to vector<2x128xf32>
    %22 = arith.addf %20, %21 : vector<2x128xf32>
    %23 = arith.select %5, %18, %22 : vector<2x128xi1>, vector<2x128xf32>
    %24 = vector.extract_strided_slice %23 {offsets = [0, 0], sizes = [2, 32], strides = [1, 1]} : vector<2x128xf32> to vector<2x32xf32>
    %25 = vector.extract_strided_slice %23 {offsets = [0, 32], sizes = [2, 32], strides = [1, 1]} : vector<2x128xf32> to vector<2x32xf32>
    %26 = vector.extract_strided_slice %23 {offsets = [0, 64], sizes = [2, 32], strides = [1, 1]} : vector<2x128xf32> to vector<2x32xf32>
    %27 = vector.extract_strided_slice %23 {offsets = [0, 96], sizes = [2, 32], strides = [1, 1]} : vector<2x128xf32> to vector<2x32xf32>
    %28 = arith.mulf %25, %17 : vector<2x32xf32>
    %29 = arith.mulf %24, %26 : vector<2x32xf32>
    %30 = arith.addf %28, %29 : vector<2x32xf32>
    %31 = math.tanh %30 : vector<2x32xf32>
    %32 = arith.mulf %27, %31 : vector<2x32xf32>
    %c0_i32 = arith.constant 0 : i32
    %33 = arith.index_cast %c0_i32 : i32 to index
    %c0_13 = arith.constant 0 : index
    %c0_14 = arith.constant 0 : index
    %34 = vector.load %arg5[%33, %c0_13, %c0_14] : memref<7x2x128xf32, #tpu.memory_space<vmem>>, vector<1x2x128xf32>
    %35 = vector.shape_cast %34 : vector<1x2x128xf32> to vector<2x128xf32>
    %36 = arith.truncf %32 : vector<2x32xf32> to vector<2x32xbf16>
    %cst_15 = arith.constant dense<0.000000e+00> : vector<2x128xf32>
    %37 = tpu.matmul %36, %6, %cst_15 {dimension_numbers = #tpu.dot_dimension_numbers<[1], [0], [0], [1], [0, 0, 1, 1], [], []>} : vector<2x32xbf16>, vector<32x128xbf16>, vector<2x128xf32> -> vector<2x128xf32>
    %38 = arith.addf %35, %37 : vector<2x128xf32>
    %39 = math.tanh %38 : vector<2x128xf32>
    %cst_16 = arith.constant 5.000000e-01 : f32
    %40 = vector.broadcast %cst_16 : f32 to vector<2x128xf32>
    %41 = arith.mulf %40, %39 : vector<2x128xf32>
    %cst_17 = arith.constant 5.000000e-01 : f32
    %42 = vector.broadcast %cst_17 : f32 to vector<2x128xf32>
    %43 = arith.addf %41, %42 : vector<2x128xf32>
    %44 = arith.select %5, %39, %43 : vector<2x128xi1>, vector<2x128xf32>
    %45 = vector.extract_strided_slice %44 {offsets = [0, 0], sizes = [2, 32], strides = [1, 1]} : vector<2x128xf32> to vector<2x32xf32>
    %46 = vector.extract_strided_slice %44 {offsets = [0, 32], sizes = [2, 32], strides = [1, 1]} : vector<2x128xf32> to vector<2x32xf32>
    %47 = vector.extract_strided_slice %44 {offsets = [0, 64], sizes = [2, 32], strides = [1, 1]} : vector<2x128xf32> to vector<2x32xf32>
    %48 = vector.extract_strided_slice %44 {offsets = [0, 96], sizes = [2, 32], strides = [1, 1]} : vector<2x128xf32> to vector<2x32xf32>
    %49 = arith.mulf %46, %30 : vector<2x32xf32>
    %50 = arith.mulf %45, %47 : vector<2x32xf32>
    %51 = arith.addf %49, %50 : vector<2x32xf32>
    %52 = math.tanh %51 : vector<2x32xf32>
    %53 = arith.mulf %48, %52 : vector<2x32xf32>
    %54 = arith.index_cast %c0_i32 : i32 to index
    %c0_18 = arith.constant 0 : index
    %c0_19 = arith.constant 0 : index
    %55 = vector.load %arg7[%54, %c0_18, %c0_19] : memref<7x2x32xf32, #tpu.memory_space<vmem>>, vector<1x2x32xf32>
    %56 = vector.shape_cast %55 : vector<1x2x32xf32> to vector<2x32xf32>
    %57 = vector.shape_cast %53 : vector<2x32xf32> to vector<1x2x32xf32>
    tpu.vector_store %arg7[%54, %c0_18, %c0_19], %57 {strides = array<i32>} : memref<7x2x32xf32, #tpu.memory_space<vmem>>, vector<1x2x32xf32>,
    %c1_i32 = arith.constant 1 : i32
    %58 = arith.index_cast %c1_i32 : i32 to index
    %c0_20 = arith.constant 0 : index
    %c0_21 = arith.constant 0 : index
    %59 = vector.load %arg5[%58, %c0_20, %c0_21] : memref<7x2x128xf32, #tpu.memory_space<vmem>>, vector<1x2x128xf32>
    %60 = vector.shape_cast %59 : vector<1x2x128xf32> to vector<2x128xf32>
    %61 = arith.truncf %53 : vector<2x32xf32> to vector<2x32xbf16>
    %cst_22 = arith.constant dense<0.000000e+00> : vector<2x128xf32>
    %62 = tpu.matmul %61, %6, %cst_22 {dimension_numbers = #tpu.dot_dimension_numbers<[1], [0], [0], [1], [0, 0, 1, 1], [], []>} : vector<2x32xbf16>, vector<32x128xbf16>, vector<2x128xf32> -> vector<2x128xf32>
    %63 = arith.addf %60, %62 : vector<2x128xf32>
    %64 = math.tanh %63 : vector<2x128xf32>
    %cst_23 = arith.constant 5.000000e-01 : f32
    %65 = vector.broadcast %cst_23 : f32 to vector<2x128xf32>
    %66 = arith.mulf %65, %64 : vector<2x128xf32>
    %cst_24 = arith.constant 5.000000e-01 : f32
    %67 = vector.broadcast %cst_24 : f32 to vector<2x128xf32>
    %68 = arith.addf %66, %67 : vector<2x128xf32>
    %69 = arith.select %5, %64, %68 : vector<2x128xi1>, vector<2x128xf32>
    %70 = vector.extract_strided_slice %69 {offsets = [0, 0], sizes = [2, 32], strides = [1, 1]} : vector<2x128xf32> to vector<2x32xf32>
    %71 = vector.extract_strided_slice %69 {offsets = [0, 32], sizes = [2, 32], strides = [1, 1]} : vector<2x128xf32> to vector<2x32xf32>
    %72 = vector.extract_strided_slice %69 {offsets = [0, 64], sizes = [2, 32], strides = [1, 1]} : vector<2x128xf32> to vector<2x32xf32>
    %73 = vector.extract_strided_slice %69 {offsets = [0, 96], sizes = [2, 32], strides = [1, 1]} : vector<2x128xf32> to vector<2x32xf32>
    %74 = arith.mulf %71, %51 : vector<2x32xf32>
    %75 = arith.mulf %70, %72 : vector<2x32xf32>
    %76 = arith.addf %74, %75 : vector<2x32xf32>
    %77 = math.tanh %76 : vector<2x32xf32>
    %78 = arith.mulf %73, %77 : vector<2x32xf32>
    %79 = arith.index_cast %c1_i32 : i32 to index
    %c0_25 = arith.constant 0 : index
    %c0_26 = arith.constant 0 : index
    %80 = vector.load %arg7[%79, %c0_25, %c0_26] : memref<7x2x32xf32, #tpu.memory_space<vmem>>, vector<1x2x32xf32>
    %81 = vector.shape_cast %80 : vector<1x2x32xf32> to vector<2x32xf32>
    %82 = vector.shape_cast %78 : vector<2x32xf32> to vector<1x2x32xf32>
    tpu.vector_store %arg7[%79, %c0_25, %c0_26], %82 {strides = array<i32>} : memref<7x2x32xf32, #tpu.memory_space<vmem>>, vector<1x2x32xf32>,
    %c2_i32 = arith.constant 2 : i32
    %83 = arith.index_cast %c2_i32 : i32 to index
    %c0_27 = arith.constant 0 : index
    %c0_28 = arith.constant 0 : index
    %84 = vector.load %arg5[%83, %c0_27, %c0_28] : memref<7x2x128xf32, #tpu.memory_space<vmem>>, vector<1x2x128xf32>
    %85 = vector.shape_cast %84 : vector<1x2x128xf32> to vector<2x128xf32>
    %86 = arith.truncf %78 : vector<2x32xf32> to vector<2x32xbf16>
    %cst_29 = arith.constant dense<0.000000e+00> : vector<2x128xf32>
    %87 = tpu.matmul %86, %6, %cst_29 {dimension_numbers = #tpu.dot_dimension_numbers<[1], [0], [0], [1], [0, 0, 1, 1], [], []>} : vector<2x32xbf16>, vector<32x128xbf16>, vector<2x128xf32> -> vector<2x128xf32>
    %88 = arith.addf %85, %87 : vector<2x128xf32>
    %89 = math.tanh %88 : vector<2x128xf32>
    %cst_30 = arith.constant 5.000000e-01 : f32
    %90 = vector.broadcast %cst_30 : f32 to vector<2x128xf32>
    %91 = arith.mulf %90, %89 : vector<2x128xf32>
    %cst_31 = arith.constant 5.000000e-01 : f32
    %92 = vector.broadcast %cst_31 : f32 to vector<2x128xf32>
    %93 = arith.addf %91, %92 : vector<2x128xf32>
    %94 = arith.select %5, %89, %93 : vector<2x128xi1>, vector<2x128xf32>
    %95 = vector.extract_strided_slice %94 {offsets = [0, 0], sizes = [2, 32], strides = [1, 1]} : vector<2x128xf32> to vector<2x32xf32>
    %96 = vector.extract_strided_slice %94 {offsets = [0, 32], sizes = [2, 32], strides = [1, 1]} : vector<2x128xf32> to vector<2x32xf32>
    %97 = vector.extract_strided_slice %94 {offsets = [0, 64], sizes = [2, 32], strides = [1, 1]} : vector<2x128xf32> to vector<2x32xf32>
    %98 = vector.extract_strided_slice %94 {offsets = [0, 96], sizes = [2, 32], strides = [1, 1]} : vector<2x128xf32> to vector<2x32xf32>
    %99 = arith.mulf %96, %76 : vector<2x32xf32>
    %100 = arith.mulf %95, %97 : vector<2x32xf32>
    %101 = arith.addf %99, %100 : vector<2x32xf32>
    %102 = math.tanh %101 : vector<2x32xf32>
    %103 = arith.mulf %98, %102 : vector<2x32xf32>
    %104 = arith.index_cast %c2_i32 : i32 to index
    %c0_32 = arith.constant 0 : index
    %c0_33 = arith.constant 0 : index
    %105 = vector.load %arg7[%104, %c0_32, %c0_33] : memref<7x2x32xf32, #tpu.memory_space<vmem>>, vector<1x2x32xf32>
    %106 = vector.shape_cast %105 : vector<1x2x32xf32> to vector<2x32xf32>
    %107 = vector.shape_cast %103 : vector<2x32xf32> to vector<1x2x32xf32>
    tpu.vector_store %arg7[%104, %c0_32, %c0_33], %107 {strides = array<i32>} : memref<7x2x32xf32, #tpu.memory_space<vmem>>, vector<1x2x32xf32>,
    %c3_i32 = arith.constant 3 : i32
    %108 = arith.index_cast %c3_i32 : i32 to index
    %c0_34 = arith.constant 0 : index
    %c0_35 = arith.constant 0 : index
    %109 = vector.load %arg5[%108, %c0_34, %c0_35] : memref<7x2x128xf32, #tpu.memory_space<vmem>>, vector<1x2x128xf32>
    %110 = vector.shape_cast %109 : vector<1x2x128xf32> to vector<2x128xf32>
    %111 = arith.truncf %103 : vector<2x32xf32> to vector<2x32xbf16>
    %cst_36 = arith.constant dense<0.000000e+00> : vector<2x128xf32>
    %112 = tpu.matmul %111, %6, %cst_36 {dimension_numbers = #tpu.dot_dimension_numbers<[1], [0], [0], [1], [0, 0, 1, 1], [], []>} : vector<2x32xbf16>, vector<32x128xbf16>, vector<2x128xf32> -> vector<2x128xf32>
    %113 = arith.addf %110, %112 : vector<2x128xf32>
    %114 = math.tanh %113 : vector<2x128xf32>
    %cst_37 = arith.constant 5.000000e-01 : f32
    %115 = vector.broadcast %cst_37 : f32 to vector<2x128xf32>
    %116 = arith.mulf %115, %114 : vector<2x128xf32>
    %cst_38 = arith.constant 5.000000e-01 : f32
    %117 = vector.broadcast %cst_38 : f32 to vector<2x128xf32>
    %118 = arith.addf %116, %117 : vector<2x128xf32>
    %119 = arith.select %5, %114, %118 : vector<2x128xi1>, vector<2x128xf32>
    %120 = vector.extract_strided_slice %119 {offsets = [0, 0], sizes = [2, 32], strides = [1, 1]} : vector<2x128xf32> to vector<2x32xf32>
    %121 = vector.extract_strided_slice %119 {offsets = [0, 32], sizes = [2, 32], strides = [1, 1]} : vector<2x128xf32> to vector<2x32xf32>
    %122 = vector.extract_strided_slice %119 {offsets = [0, 64], sizes = [2, 32], strides = [1, 1]} : vector<2x128xf32> to vector<2x32xf32>
    %123 = vector.extract_strided_slice %119 {offsets = [0, 96], sizes = [2, 32], strides = [1, 1]} : vector<2x128xf32> to vector<2x32xf32>
    %124 = arith.mulf %121, %101 : vector<2x32xf32>
    %125 = arith.mulf %120, %122 : vector<2x32xf32>
    %126 = arith.addf %124, %125 : vector<2x32xf32>
    %127 = math.tanh %126 : vector<2x32xf32>
    %128 = arith.mulf %123, %127 : vector<2x32xf32>
    %129 = arith.index_cast %c3_i32 : i32 to index
    %c0_39 = arith.constant 0 : index
    %c0_40 = arith.constant 0 : index
    %130 = vector.load %arg7[%129, %c0_39, %c0_40] : memref<7x2x32xf32, #tpu.memory_space<vmem>>, vector<1x2x32xf32>
    %131 = vector.shape_cast %130 : vector<1x2x32xf32> to vector<2x32xf32>
    %132 = vector.shape_cast %128 : vector<2x32xf32> to vector<1x2x32xf32>
    tpu.vector_store %arg7[%129, %c0_39, %c0_40], %132 {strides = array<i32>} : memref<7x2x32xf32, #tpu.memory_space<vmem>>, vector<1x2x32xf32>,
    %c4_i32 = arith.constant 4 : i32
    %133 = arith.index_cast %c4_i32 : i32 to index
    %c0_41 = arith.constant 0 : index
    %c0_42 = arith.constant 0 : index
    %134 = vector.load %arg5[%133, %c0_41, %c0_42] : memref<7x2x128xf32, #tpu.memory_space<vmem>>, vector<1x2x128xf32>
    %135 = vector.shape_cast %134 : vector<1x2x128xf32> to vector<2x128xf32>
    %136 = arith.truncf %128 : vector<2x32xf32> to vector<2x32xbf16>
    %cst_43 = arith.constant dense<0.000000e+00> : vector<2x128xf32>
    %137 = tpu.matmul %136, %6, %cst_43 {dimension_numbers = #tpu.dot_dimension_numbers<[1], [0], [0], [1], [0, 0, 1, 1], [], []>} : vector<2x32xbf16>, vector<32x128xbf16>, vector<2x128xf32> -> vector<2x128xf32>
    %138 = arith.addf %135, %137 : vector<2x128xf32>
    %139 = math.tanh %138 : vector<2x128xf32>
    %cst_44 = arith.constant 5.000000e-01 : f32
    %140 = vector.broadcast %cst_44 : f32 to vector<2x128xf32>
    %141 = arith.mulf %140, %139 : vector<2x128xf32>
    %cst_45 = arith.constant 5.000000e-01 : f32
    %142 = vector.broadcast %cst_45 : f32 to vector<2x128xf32>
    %143 = arith.addf %141, %142 : vector<2x128xf32>
    %144 = arith.select %5, %139, %143 : vector<2x128xi1>, vector<2x128xf32>
    %145 = vector.extract_strided_slice %144 {offsets = [0, 0], sizes = [2, 32], strides = [1, 1]} : vector<2x128xf32> to vector<2x32xf32>
    %146 = vector.extract_strided_slice %144 {offsets = [0, 32], sizes = [2, 32], strides = [1, 1]} : vector<2x128xf32> to vector<2x32xf32>
    %147 = vector.extract_strided_slice %144 {offsets = [0, 64], sizes = [2, 32], strides = [1, 1]} : vector<2x128xf32> to vector<2x32xf32>
    %148 = vector.extract_strided_slice %144 {offsets = [0, 96], sizes = [2, 32], strides = [1, 1]} : vector<2x128xf32> to vector<2x32xf32>
    %149 = arith.mulf %146, %126 : vector<2x32xf32>
    %150 = arith.mulf %145, %147 : vector<2x32xf32>
    %151 = arith.addf %149, %150 : vector<2x32xf32>
    %152 = math.tanh %151 : vector<2x32xf32>
    %153 = arith.mulf %148, %152 : vector<2x32xf32>
    %154 = arith.index_cast %c4_i32 : i32 to index
    %c0_46 = arith.constant 0 : index
    %c0_47 = arith.constant 0 : index
    %155 = vector.load %arg7[%154, %c0_46, %c0_47] : memref<7x2x32xf32, #tpu.memory_space<vmem>>, vector<1x2x32xf32>
    %156 = vector.shape_cast %155 : vector<1x2x32xf32> to vector<2x32xf32>
    %157 = vector.shape_cast %153 : vector<2x32xf32> to vector<1x2x32xf32>
    tpu.vector_store %arg7[%154, %c0_46, %c0_47], %157 {strides = array<i32>} : memref<7x2x32xf32, #tpu.memory_space<vmem>>, vector<1x2x32xf32>,
    %c5_i32 = arith.constant 5 : i32
    %158 = arith.index_cast %c5_i32 : i32 to index
    %c0_48 = arith.constant 0 : index
    %c0_49 = arith.constant 0 : index
    %159 = vector.load %arg5[%158, %c0_48, %c0_49] : memref<7x2x128xf32, #tpu.memory_space<vmem>>, vector<1x2x128xf32>
    %160 = vector.shape_cast %159 : vector<1x2x128xf32> to vector<2x128xf32>
    %161 = arith.truncf %153 : vector<2x32xf32> to vector<2x32xbf16>
    %cst_50 = arith.constant dense<0.000000e+00> : vector<2x128xf32>
    %162 = tpu.matmul %161, %6, %cst_50 {dimension_numbers = #tpu.dot_dimension_numbers<[1], [0], [0], [1], [0, 0, 1, 1], [], []>} : vector<2x32xbf16>, vector<32x128xbf16>, vector<2x128xf32> -> vector<2x128xf32>
    %163 = arith.addf %160, %162 : vector<2x128xf32>
    %164 = math.tanh %163 : vector<2x128xf32>
    %cst_51 = arith.constant 5.000000e-01 : f32
    %165 = vector.broadcast %cst_51 : f32 to vector<2x128xf32>
    %166 = arith.mulf %165, %164 : vector<2x128xf32>
    %cst_52 = arith.constant 5.000000e-01 : f32
    %167 = vector.broadcast %cst_52 : f32 to vector<2x128xf32>
    %168 = arith.addf %166, %167 : vector<2x128xf32>
    %169 = arith.select %5, %164, %168 : vector<2x128xi1>, vector<2x128xf32>
    %170 = vector.extract_strided_slice %169 {offsets = [0, 0], sizes = [2, 32], strides = [1, 1]} : vector<2x128xf32> to vector<2x32xf32>
    %171 = vector.extract_strided_slice %169 {offsets = [0, 32], sizes = [2, 32], strides = [1, 1]} : vector<2x128xf32> to vector<2x32xf32>
    %172 = vector.extract_strided_slice %169 {offsets = [0, 64], sizes = [2, 32], strides = [1, 1]} : vector<2x128xf32> to vector<2x32xf32>
    %173 = vector.extract_strided_slice %169 {offsets = [0, 96], sizes = [2, 32], strides = [1, 1]} : vector<2x128xf32> to vector<2x32xf32>
    %174 = arith.mulf %171, %151 : vector<2x32xf32>
    %175 = arith.mulf %170, %172 : vector<2x32xf32>
    %176 = arith.addf %174, %175 : vector<2x32xf32>
    %177 = math.tanh %176 : vector<2x32xf32>
    %178 = arith.mulf %173, %177 : vector<2x32xf32>
    %179 = arith.index_cast %c5_i32 : i32 to index
    %c0_53 = arith.constant 0 : index
    %c0_54 = arith.constant 0 : index
    %180 = vector.load %arg7[%179, %c0_53, %c0_54] : memref<7x2x32xf32, #tpu.memory_space<vmem>>, vector<1x2x32xf32>
    %181 = vector.shape_cast %180 : vector<1x2x32xf32> to vector<2x32xf32>
    %182 = vector.shape_cast %178 : vector<2x32xf32> to vector<1x2x32xf32>
    tpu.vector_store %arg7[%179, %c0_53, %c0_54], %182 {strides = array<i32>} : memref<7x2x32xf32, #tpu.memory_space<vmem>>, vector<1x2x32xf32>,
    %c6_i32 = arith.constant 6 : i32
    %183 = arith.index_cast %c6_i32 : i32 to index
    %c0_55 = arith.constant 0 : index
    %c0_56 = arith.constant 0 : index
    %184 = vector.load %arg5[%183, %c0_55, %c0_56] : memref<7x2x128xf32, #tpu.memory_space<vmem>>, vector<1x2x128xf32>
    %185 = vector.shape_cast %184 : vector<1x2x128xf32> to vector<2x128xf32>
    %186 = arith.truncf %178 : vector<2x32xf32> to vector<2x32xbf16>
    %cst_57 = arith.constant dense<0.000000e+00> : vector<2x128xf32>
    %187 = tpu.matmul %186, %6, %cst_57 {dimension_numbers = #tpu.dot_dimension_numbers<[1], [0], [0], [1], [0, 0, 1, 1], [], []>} : vector<2x32xbf16>, vector<32x128xbf16>, vector<2x128xf32> -> vector<2x128xf32>
    %188 = arith.addf %185, %187 : vector<2x128xf32>
    %189 = math.tanh %188 : vector<2x128xf32>
    %cst_58 = arith.constant 5.000000e-01 : f32
    %190 = vector.broadcast %cst_58 : f32 to vector<2x128xf32>
    %191 = arith.mulf %190, %189 : vector<2x128xf32>
    %cst_59 = arith.constant 5.000000e-01 : f32
    %192 = vector.broadcast %cst_59 : f32 to vector<2x128xf32>
    %193 = arith.addf %191, %192 : vector<2x128xf32>
    %194 = arith.select %5, %189, %193 : vector<2x128xi1>, vector<2x128xf32>
    %195 = vector.extract_strided_slice %194 {offsets = [0, 0], sizes = [2, 32], strides = [1, 1]} : vector<2x128xf32> to vector<2x32xf32>
    %196 = vector.extract_strided_slice %194 {offsets = [0, 32], sizes = [2, 32], strides = [1, 1]} : vector<2x128xf32> to vector<2x32xf32>
    %197 = vector.extract_strided_slice %194 {offsets = [0, 64], sizes = [2, 32], strides = [1, 1]} : vector<2x128xf32> to vector<2x32xf32>
    %198 = vector.extract_strided_slice %194 {offsets = [0, 96], sizes = [2, 32], strides = [1, 1]} : vector<2x128xf32> to vector<2x32xf32>
    %199 = arith.mulf %196, %176 : vector<2x32xf32>
    %200 = arith.mulf %195, %197 : vector<2x32xf32>
    %201 = arith.addf %199, %200 : vector<2x32xf32>
    %202 = math.tanh %201 : vector<2x32xf32>
    %203 = arith.mulf %198, %202 : vector<2x32xf32>
    %204 = arith.index_cast %c6_i32 : i32 to index
    %c0_60 = arith.constant 0 : index
    %c0_61 = arith.constant 0 : index
    %205 = vector.load %arg7[%204, %c0_60, %c0_61] : memref<7x2x32xf32, #tpu.memory_space<vmem>>, vector<1x2x32xf32>
    %206 = vector.shape_cast %205 : vector<1x2x32xf32> to vector<2x32xf32>
    %207 = vector.shape_cast %203 : vector<2x32xf32> to vector<1x2x32xf32>
    tpu.vector_store %arg7[%204, %c0_60, %c0_61], %207 {strides = array<i32>} : memref<7x2x32xf32, #tpu.memory_space<vmem>>, vector<1x2x32xf32>,
    %c7_i32 = arith.constant 7 : i32
    return
  }
  func.func @transform_0(%arg0: i32) -> (i32, i32) {
    %c0_i32 = arith.constant 0 : i32
    %c0_i32_0 = arith.constant 0 : i32
    %c0_i32_1 = arith.constant 0 : i32
    return %c0_i32, %c0_i32_0 : i32, i32
  }
  func.func @transform_1(%arg0: i32) -> (i32, i32) {
    %c0_i32 = arith.constant 0 : i32
    %c0_i32_0 = arith.constant 0 : i32
    %c0_i32_1 = arith.constant 0 : i32
    return %c0_i32, %c0_i32_0 : i32, i32
  }
  func.func @transform_2(%arg0: i32) -> (i32, i32) {
    %c0_i32 = arith.constant 0 : i32
    %c0_i32_0 = arith.constant 0 : i32
    %c0_i32_1 = arith.constant 0 : i32
    return %c0_i32, %c0_i32_0 : i32, i32
  }
  func.func @transform_3(%arg0: i32) -> (i32, i32) {
    %c0_i32 = arith.constant 0 : i32
    %c0_i32_0 = arith.constant 0 : i32
    %c0_i32_1 = arith.constant 0 : i32
    return %c0_i32, %c0_i32_0 : i32, i32
  }
  func.func @transform_4(%arg0: i32) -> (i32, i32, i32) {
    %c0_i32 = arith.constant 0 : i32
    %c0_i32_0 = arith.constant 0 : i32
    %c0_i32_1 = arith.constant 0 : i32
    %c0_i32_2 = arith.constant 0 : i32
    return %c0_i32, %c0_i32_0, %c0_i32_1 : i32, i32, i32
  }
  func.func @transform_5(%arg0: i32) -> (i32, i32) {
    %c0_i32 = arith.constant 0 : i32
    %c0_i32_0 = arith.constant 0 : i32
    %c0_i32_1 = arith.constant 0 : i32
    return %c0_i32, %c0_i32_0 : i32, i32
  }
  func.func @transform_6(%arg0: i32) -> (i32, i32, i32) {
    %c0_i32 = arith.constant 0 : i32
    %c0_i32_0 = arith.constant 0 : i32
    %c0_i32_1 = arith.constant 0 : i32
    %c0_i32_2 = arith.constant 0 : i32
    return %c0_i32, %c0_i32_0, %c0_i32_1 : i32, i32, i32
  }
}

</mosaic_0001>

<llo_original>
// kernel: tpu_custom_call.1
$region0: #{tpu_custom_call.1}
  #allocation0 [shape = 'u32[]', space=smem, size = 0x4, offset = 0x4, fixed_abs, tag = 'smem constant byte address 0x4 - core index']
  #allocation1 [shape = 'u32[144,128]{1,0:T(1,128)}', space=vmem, size = 0x12000, scoped, tag = 'internal scratch']
  %s0 = inlined_call_operand.vmem [shape: f32[2,64], index: 0, kind: input, shape index: {}]
  %s1 = inlined_call_operand.vmem [shape: bf16[64,32], index: 1, kind: input, shape index: {}]
  %s2 = inlined_call_operand.vmem [shape: f32[1,32], index: 2, kind: input, shape index: {}]
  %s3 = inlined_call_operand.vmem [shape: bf16[32,128], index: 3, kind: input, shape index: {}]
  %s4 = inlined_call_operand.vmem [shape: f32[7,2,128], index: 4, kind: input, shape index: {}]
  %s5 = inlined_call_operand.vmem [shape: bf16[32,128], index: 5, kind: input, shape index: {}]
  %s6 = inlined_call_operand.hbm [shape: f32[7,2,32], index: 6, kind: output, shape index: {}]
  %s7 = sld [smem:[#allocation0]]
  $region34: #{tpu_custom_call.1} parent=0
    _
  %s9 = ssub.s32 1, %s7
  %s10 = scalar_select 0, %s9, %s7
  $region1: #{tpu_custom_call.1} parent=0
    #allocation2 [shape = 'u8[7168]{0}', space=vmem, size = 0x1c00, scoped, tag = 'output window, operand 0, single buffered']
    #allocation3 [shape = 's32[1]{0}', space=sflag, size = 0x4, scoped, tag = 'scoped memory for tpu_custom_call.1']
    %11 = vsyncpa [#allocation3], 0
    // Predicated region
    $region2: #{tpu_custom_call.1} parent=1 // pred_check
      _
    $region3: #{tpu_custom_call.1} parent=1 // pred_check_branch
      %13 = sbr.rel (0) target = $region5
    $region4: #{tpu_custom_call.1} parent=1 // pred_region
      _
    $region5: #{tpu_custom_call.1} parent=1 // pred_fallthru
      _
    // Predicated region
    $region6: #{tpu_custom_call.1} parent=1 // pred_check
      _
    $region7: #{tpu_custom_call.1} parent=1 // pred_check_branch
      %15 = sbr.rel (0) target = $region9
    $region8: #{tpu_custom_call.1} parent=1 // pred_region
      _
    $region9: #{tpu_custom_call.1} parent=1 // pred_fallthru
      _
    // Predicated region
    $region10: #{tpu_custom_call.1} parent=1 // pred_check
      _
    $region11: #{tpu_custom_call.1} parent=1 // pred_check_branch
      %17 = sbr.rel (0) target = $region13
    $region12: #{tpu_custom_call.1} parent=1 // pred_region
      _
    $region13: #{tpu_custom_call.1} parent=1 // pred_fallthru
      _
    // Predicated region
    $region14: #{tpu_custom_call.1} parent=1 // pred_check
      _
    $region15: #{tpu_custom_call.1} parent=1 // pred_check_branch
      %19 = sbr.rel (0) target = $region17
    $region16: #{tpu_custom_call.1} parent=1 // pred_region
      _
    $region17: #{tpu_custom_call.1} parent=1 // pred_fallthru
      _
    // Predicated region
    $region18: #{tpu_custom_call.1} parent=1 // pred_check
      _
    $region19: #{tpu_custom_call.1} parent=1 // pred_check_branch
      %21 = sbr.rel (0) target = $region21
    $region20: #{tpu_custom_call.1} parent=1 // pred_region
      _
    $region21: #{tpu_custom_call.1} parent=1 // pred_fallthru
      _
    // Predicated region
    $region22: #{tpu_custom_call.1} parent=1 // pred_check
      _
    $region23: #{tpu_custom_call.1} parent=1 // pred_check_branch
      %23 = sbr.rel (0) target = $region25
    $region24: #{tpu_custom_call.1} parent=1 // pred_region
      _
    $region25: #{tpu_custom_call.1} parent=1 // pred_fallthru
      _
    %v25 = vlaneseq
    %v26 = vand.u32 %v25, 127
    %vm27 = vcmp.ge.s32.totalorder %v26, 64
    %vm28 = vcmp.lt.s32.totalorder %v26, 96
    %vm29 = vmand %vm27, %vm28
    %v30 = vld [vmem:[%s5] sm:$0xf]
    %v31 = vld [vmem:[%s5 + $0x4] sm:$0xf]
    %v32 = vld [vmem:[%s5 + $0x8] sm:$0xf]
    %v33 = vld [vmem:[%s5 + $0xc] sm:$0xf]
    %v34 = vld [vmem:[%s0] sm:$0x3]
    %v35 = vpack.c.bf16 %v34, %v34
    %v36 = vld [vmem:[%s1] sm:$0xf]
    %v37 = vld [vmem:[%s1 + $0x4] sm:$0xf]
    %v38 = vld [vmem:[%s1 + $0x8] sm:$0xf]
    %v39 = vld [vmem:[%s1 + $0xc] sm:$0xf]
    %v40 = vld [vmem:[%s1 + $0x10] sm:$0xf]
    %v41 = vld [vmem:[%s1 + $0x14] sm:$0xf]
    %v42 = vld [vmem:[%s1 + $0x18] sm:$0xf]
    %v43 = vld [vmem:[%s1 + $0x1c] sm:$0xf]
    %v44 = vld [vmem:[%s2] sm:$0x1]
    %v46 = vlaneseq
    %v47 = vshrl.u32 %v46, 7
    %v48 = vsub.s32 0, %v47
    %v49 = vrot.slane %v44, %v48
    %v59 = vunpack.c.l.b16 %v36
    %v60 = vunpack.c.l.b16 %v37
    %v61 = vunpack.c.l.b16 %v38
    %v62 = vunpack.c.l.b16 %v39
    %v63 = vunpack.c.l.b16 %v40
    %v64 = vunpack.c.l.b16 %v41
    %v65 = vunpack.c.l.b16 %v42
    %v66 = vunpack.c.l.b16 %v43
    %v67 = vpack.c.b16 %v60, %v59
    %v68 = vpack.c.b16 %v62, %v61
    %v69 = vpack.c.b16 %v64, %v63
    %v70 = vpack.c.b16 %v66, %v65
    %vm75 = vcmask 523264
    %v77 = vsel %vm75, %v35, 0
    %79 = vmatprep.subr.bf16.mxu0 0
    %80 = vmatpush1.bf16.msra.mxu0 %v67
    %81 = vmatprep.subr.bf16.mxu0 0
    %82 = vmatpush1.bf16.msra.mxu0 %v68
    %83 = vmatprep.subr.bf16.mxu0 0
    %84 = vmatpush1.bf16.msra.mxu0 %v69
    %85 = vmatprep.subr.bf16.mxu0 0
    %86 = vmatpush1.bf16.msra.mxu0 %v70
    %87 = vmatprep.subr.bf16.mxu0 0
    %88 = vmatpush1.bf16.msra.mxu0 0
    %89 = vmatprep.subr.bf16.mxu0 0
    %90 = vmatpush1.bf16.msra.mxu0 0
    %91 = vmatprep.subr.bf16.mxu0 0
    %92 = vmatpush1.bf16.msra.mxu0 0
    %93 = vmatprep.subr.bf16.mxu0 0
    %94 = vmatpush1.bf16.msra.mxu0 0
    %95 = vmatprep.subr.bf16.mxu0 0
    %96 = vmatpush1.bf16.msra.mxu0 0
    %97 = vmatprep.subr.bf16.mxu0 0
    %98 = vmatpush1.bf16.msra.mxu0 0
    %99 = vmatprep.subr.bf16.mxu0 0
    %100 = vmatpush1.bf16.msra.mxu0 0
    %101 = vmatprep.subr.bf16.mxu0 0
    %102 = vmatpush1.bf16.msra.mxu0 0
    %103 = vmatprep.subr.bf16.mxu0 0
    %104 = vmatpush1.bf16.msra.mxu0 0
    %105 = vmatprep.subr.bf16.mxu0 0
    %106 = vmatpush1.bf16.msra.mxu0 0
    %107 = vmatprep.subr.bf16.mxu0 0
    %108 = vmatpush1.bf16.msra.mxu0 0
    %109 = vmatprep.subr.bf16.mxu0 0
    %110 = vmatpush1.bf16.msra.mxu0 0
    %111 = vmatprep.mubr.bf16.mxu0 0
    %112 = vmatmul.mubr.bf16.gmra.mrb[0].mxu0 %v77
    %v113 = vpop.f32.mrb[0].mxu0
    %v114 = vadd.f32 %v49, %v113
    %v115 = vpop.f32.mrb[0].mxu0
    %v116 = vpop.f32.mrb[0].mxu0
    %v117 = vpop.f32.mrb[0].mxu0
    %118 = vdwg.mxu0
    %v119 = vpack.c.bf16 %v114, %v114
    %v120 = vld [vmem:[%s3] sm:$0xf]
    %v121 = vld [vmem:[%s3 + $0x4] sm:$0xf]
    %v122 = vld [vmem:[%s3 + $0x8] sm:$0xf]
    %v123 = vld [vmem:[%s3 + $0xc] sm:$0xf]
    %v128 = vunpack.c.l.b16 %v120
    %v129 = vunpack.c.l.b16 %v121
    %v130 = vunpack.c.l.b16 %v122
    %v131 = vunpack.c.l.b16 %v123
    %v132 = vpack.c.b16 %v129, %v128
    %v133 = vpack.c.b16 %v131, %v130
    %vm136 = vcmask 261120
    %v138 = vsel %vm136, %v119, 0
    %140 = vmatprep.subr.bf16.mxu0 0
    %141 = vmatpush1.bf16.msra.mxu0 %v132
    %142 = vmatprep.subr.bf16.mxu0 0
    %143 = vmatpush1.bf16.msra.mxu0 %v133
    %144 = vmatprep.subr.bf16.mxu0 0
    %145 = vmatpush1.bf16.msra.mxu0 0
    %146 = vmatprep.subr.bf16.mxu0 0
    %147 = vmatpush1.bf16.msra.mxu0 0
    %148 = vmatprep.subr.bf16.mxu0 0
    %149 = vmatpush1.bf16.msra.mxu0 0
    %150 = vmatprep.subr.bf16.mxu0 0
    %151 = vmatpush1.bf16.msra.mxu0 0
    %152 = vmatprep.subr.bf16.mxu0 0
    %153 = vmatpush1.bf16.msra.mxu0 0
    %154 = vmatprep.subr.bf16.mxu0 0
    %155 = vmatpush1.bf16.msra.mxu0 0
    %156 = vmatprep.subr.bf16.mxu0 0
    %157 = vmatpush1.bf16.msra.mxu0 0
    %158 = vmatprep.subr.bf16.mxu0 0
    %159 = vmatpush1.bf16.msra.mxu0 0
    %160 = vmatprep.subr.bf16.mxu0 0
    %161 = vmatpush1.bf16.msra.mxu0 0
    %162 = vmatprep.subr.bf16.mxu0 0
    %163 = vmatpush1.bf16.msra.mxu0 0
    %164 = vmatprep.subr.bf16.mxu0 0
    %165 = vmatpush1.bf16.msra.mxu0 0
    %166 = vmatprep.subr.bf16.mxu0 0
    %167 = vmatpush1.bf16.msra.mxu0 0
    %168 = vmatprep.subr.bf16.mxu0 0
    %169 = vmatpush1.bf16.msra.mxu0 0
    %170 = vmatprep.subr.bf16.mxu0 0
    %171 = vmatpush1.bf16.msra.mxu0 0
    %172 = vmatprep.mubr.bf16.mxu0 0
    %173 = vmatmul.mubr.bf16.gmra.mrb[0].mxu0 %v138
    %v174 = vpop.f32.mrb[0].mxu0
    %v175 = vadd.f32 0.0, %v174
    %v176 = vpop.f32.mrb[0].mxu0
    %v177 = vpop.f32.mrb[0].mxu0
    %v178 = vpop.f32.mrb[0].mxu0
    %179 = vdwg.mxu0
    %v180 = vtanh.pop %v175
    %v181 = vmul.f32 %v180, 0.5
    %v182 = vadd.f32 %v181, 0.5
    %v183 = vsel %vm29, %v180, %v182
    %v184 = vmul.f32 %v183, 0.0
    %186 = vrot.lane.b32.xlu0 %v183, 64
    %v187 = vpop.permute.xlu0 %186
    %v189 = vmul.f32 %v183, %v187
    %191 = vrot.lane.b32.xlu0 %v189, 32
    %v192 = vpop.permute.xlu0 %191
    %v194 = vadd.f32 %v184, %v192
    %v195 = vtanh.pop %v194
    %197 = vrot.lane.b32.xlu0 %v195, 64
    %v198 = vpop.permute.xlu0 %197
    %v200 = vmul.f32 %v183, %v198
    %v201 = vld [vmem:[%s4] sm:$0x3]
    %v202 = vpack.c.bf16 %v200, %v200
    %204 = vrot.lane.b32.xlu0 %v202, 32
    %v205 = vpop.permute.xlu0 %204
    %v210 = vunpack.c.l.b16 %v30
    %v211 = vunpack.c.l.b16 %v31
    %v212 = vunpack.c.l.b16 %v32
    %v213 = vunpack.c.l.b16 %v33
    %v214 = vpack.c.b16 %v211, %v210
    %v215 = vpack.c.b16 %v213, %v212
    %v219 = vsel %vm136, %v205, 0
    %221 = vmatprep.subr.bf16.mxu0 0
    %222 = vmatpush1.bf16.msra.mxu0 %v214
    %223 = vmatprep.subr.bf16.mxu0 0
    %224 = vmatpush1.bf16.msra.mxu0 %v215
    %225 = vmatprep.subr.bf16.mxu0 0
    %226 = vmatpush1.bf16.msra.mxu0 0
    %227 = vmatprep.subr.bf16.mxu0 0
    %228 = vmatpush1.bf16.msra.mxu0 0
    %229 = vmatprep.subr.bf16.mxu0 0
    %230 = vmatpush1.bf16.msra.mxu0 0
    %231 = vmatprep.subr.bf16.mxu0 0
    %232 = vmatpush1.bf16.msra.mxu0 0
    %233 = vmatprep.subr.bf16.mxu0 0
    %234 = vmatpush1.bf16.msra.mxu0 0
    %235 = vmatprep.subr.bf16.mxu0 0
    %236 = vmatpush1.bf16.msra.mxu0 0
    %237 = vmatprep.subr.bf16.mxu0 0
    %238 = vmatpush1.bf16.msra.mxu0 0
    %239 = vmatprep.subr.bf16.mxu0 0
    %240 = vmatpush1.bf16.msra.mxu0 0
    %241 = vmatprep.subr.bf16.mxu0 0
    %242 = vmatpush1.bf16.msra.mxu0 0
    %243 = vmatprep.subr.bf16.mxu0 0
    %244 = vmatpush1.bf16.msra.mxu0 0
    %245 = vmatprep.subr.bf16.mxu0 0
    %246 = vmatpush1.bf16.msra.mxu0 0
    %247 = vmatprep.subr.bf16.mxu0 0
    %248 = vmatpush1.bf16.msra.mxu0 0
    %249 = vmatprep.subr.bf16.mxu0 0
    %250 = vmatpush1.bf16.msra.mxu0 0
    %251 = vmatprep.subr.bf16.mxu0 0
    %252 = vmatpush1.bf16.msra.mxu0 0
    %253 = vmatprep.mubr.bf16.mxu0 0
    %254 = vmatmul.mubr.bf16.gmra.mrb[0].mxu0 %v219
    %v255 = vpop.f32.mrb[0].mxu0
    %v256 = vadd.f32 0.0, %v255
    %v257 = vpop.f32.mrb[0].mxu0
    %v258 = vpop.f32.mrb[0].mxu0
    %v259 = vpop.f32.mrb[0].mxu0
    %260 = vdwg.mxu0
    %v261 = vadd.f32 %v201, %v256
    %v262 = vtanh.pop %v261
    %v263 = vmul.f32 %v262, 0.5
    %v264 = vadd.f32 %v263, 0.5
    %v265 = vsel %vm29, %v262, %v264
    %v266 = vmul.f32 %v265, %v194
    %268 = vrot.lane.b32.xlu0 %v265, 64
    %v269 = vpop.permute.xlu0 %268
    %v271 = vmul.f32 %v265, %v269
    %273 = vrot.lane.b32.xlu0 %v271, 32
    %v274 = vpop.permute.xlu0 %273
    %v276 = vadd.f32 %v266, %v274
    %v277 = vtanh.pop %v276
    %279 = vrot.lane.b32.xlu0 %v277, 64
    %v280 = vpop.permute.xlu0 %279
    %v282 = vmul.f32 %v265, %v280
    %284 = vrot.lane.b32.xlu0 %v282, 32
    %v285 = vpop.permute.xlu0 %284
    %vm287 = vcmask 254976
    %288 = vst.msk [vmem:[#allocation2] sm:$0x3] %vm287, %v285
    %s289 = scalar_lea.vmem %s4, 2
    %v290 = vld [vmem:[%s289] sm:$0x3]
    %v291 = vpack.c.bf16 %v282, %v282
    %293 = vrot.lane.b32.xlu0 %v291, 32
    %v294 = vpop.permute.xlu0 %293
    %v296 = vsel %vm136, %v294, 0
    %298 = vmatprep.subr.bf16.mxu0 0
    %299 = vmatpush1.bf16.msra.mxu0 %v214
    %300 = vmatprep.subr.bf16.mxu0 0
    %301 = vmatpush1.bf16.msra.mxu0 %v215
    %302 = vmatprep.subr.bf16.mxu0 0
    %303 = vmatpush1.bf16.msra.mxu0 0
    %304 = vmatprep.subr.bf16.mxu0 0
    %305 = vmatpush1.bf16.msra.mxu0 0
    %306 = vmatprep.subr.bf16.mxu0 0
    %307 = vmatpush1.bf16.msra.mxu0 0
    %308 = vmatprep.subr.bf16.mxu0 0
    %309 = vmatpush1.bf16.msra.mxu0 0
    %310 = vmatprep.subr.bf16.mxu0 0
    %311 = vmatpush1.bf16.msra.mxu0 0
    %312 = vmatprep.subr.bf16.mxu0 0
    %313 = vmatpush1.bf16.msra.mxu0 0
    %314 = vmatprep.subr.bf16.mxu0 0
    %315 = vmatpush1.bf16.msra.mxu0 0
    %316 = vmatprep.subr.bf16.mxu0 0
    %317 = vmatpush1.bf16.msra.mxu0 0
    %318 = vmatprep.subr.bf16.mxu0 0
    %319 = vmatpush1.bf16.msra.mxu0 0
    %320 = vmatprep.subr.bf16.mxu0 0
    %321 = vmatpush1.bf16.msra.mxu0 0
    %322 = vmatprep.subr.bf16.mxu0 0
    %323 = vmatpush1.bf16.msra.mxu0 0
    %324 = vmatprep.subr.bf16.mxu0 0
    %325 = vmatpush1.bf16.msra.mxu0 0
    %326 = vmatprep.subr.bf16.mxu0 0
    %327 = vmatpush1.bf16.msra.mxu0 0
    %328 = vmatprep.subr.bf16.mxu0 0
    %329 = vmatpush1.bf16.msra.mxu0 0
    %330 = vmatprep.mubr.bf16.mxu0 0
    %331 = vmatmul.mubr.bf16.gmra.mrb[0].mxu0 %v296
    %v332 = vpop.f32.mrb[0].mxu0
    %v333 = vadd.f32 0.0, %v332
    %v334 = vpop.f32.mrb[0].mxu0
    %v335 = vpop.f32.mrb[0].mxu0
    %v336 = vpop.f32.mrb[0].mxu0
    %337 = vdwg.mxu0
    %v338 = vadd.f32 %v290, %v333
    %v339 = vtanh.pop %v338
    %v340 = vmul.f32 %v339, 0.5
    %v341 = vadd.f32 %v340, 0.5
    %v342 = vsel %vm29, %v339, %v341
    %v343 = vmul.f32 %v342, %v276
    %345 = vrot.lane.b32.xlu0 %v342, 64
    %v346 = vpop.permute.xlu0 %345
    %v348 = vmul.f32 %v342, %v346
    %350 = vrot.lane.b32.xlu0 %v348, 32
    %v351 = vpop.permute.xlu0 %350
    %v353 = vadd.f32 %v343, %v351
    %v354 = vtanh.pop %v353
    %356 = vrot.lane.b32.xlu0 %v354, 64
    %v357 = vpop.permute.xlu0 %356
    %v359 = vmul.f32 %v342, %v357
    %361 = vrot.lane.b32.xlu0 %v359, 32
    %v362 = vpop.permute.xlu0 %361
    %s364 = scalar_lea.vmem [#allocation2], 2
    %365 = vst.msk [vmem:[%s364] sm:$0x3] %vm287, %v362
    %s366 = scalar_lea.vmem %s4, 4
    %v367 = vld [vmem:[%s366] sm:$0x3]
    %v368 = vpack.c.bf16 %v359, %v359
    %370 = vrot.lane.b32.xlu0 %v368, 32
    %v371 = vpop.permute.xlu0 %370
    %v373 = vsel %vm136, %v371, 0
    %375 = vmatprep.subr.bf16.mxu0 0
    %376 = vmatpush1.bf16.msra.mxu0 %v214
    %377 = vmatprep.subr.bf16.mxu0 0
    %378 = vmatpush1.bf16.msra.mxu0 %v215
    %379 = vmatprep.subr.bf16.mxu0 0
    %380 = vmatpush1.bf16.msra.mxu0 0
    %381 = vmatprep.subr.bf16.mxu0 0
    %382 = vmatpush1.bf16.msra.mxu0 0
    %383 = vmatprep.subr.bf16.mxu0 0
    %384 = vmatpush1.bf16.msra.mxu0 0
    %385 = vmatprep.subr.bf16.mxu0 0
    %386 = vmatpush1.bf16.msra.mxu0 0
    %387 = vmatprep.subr.bf16.mxu0 0
    %388 = vmatpush1.bf16.msra.mxu0 0
    %389 = vmatprep.subr.bf16.mxu0 0
    %390 = vmatpush1.bf16.msra.mxu0 0
    %391 = vmatprep.subr.bf16.mxu0 0
    %392 = vmatpush1.bf16.msra.mxu0 0
    %393 = vmatprep.subr.bf16.mxu0 0
    %394 = vmatpush1.bf16.msra.mxu0 0
    %395 = vmatprep.subr.bf16.mxu0 0
    %396 = vmatpush1.bf16.msra.mxu0 0
    %397 = vmatprep.subr.bf16.mxu0 0
    %398 = vmatpush1.bf16.msra.mxu0 0
    %399 = vmatprep.subr.bf16.mxu0 0
    %400 = vmatpush1.bf16.msra.mxu0 0
    %401 = vmatprep.subr.bf16.mxu0 0
    %402 = vmatpush1.bf16.msra.mxu0 0
    %403 = vmatprep.subr.bf16.mxu0 0
    %404 = vmatpush1.bf16.msra.mxu0 0
    %405 = vmatprep.subr.bf16.mxu0 0
    %406 = vmatpush1.bf16.msra.mxu0 0
    %407 = vmatprep.mubr.bf16.mxu0 0
    %408 = vmatmul.mubr.bf16.gmra.mrb[0].mxu0 %v373
    %v409 = vpop.f32.mrb[0].mxu0
    %v410 = vadd.f32 0.0, %v409
    %v411 = vpop.f32.mrb[0].mxu0
    %v412 = vpop.f32.mrb[0].mxu0
    %v413 = vpop.f32.mrb[0].mxu0
    %414 = vdwg.mxu0
    %v415 = vadd.f32 %v367, %v410
    %v416 = vtanh.pop %v415
    %v417 = vmul.f32 %v416, 0.5
    %v418 = vadd.f32 %v417, 0.5
    %v419 = vsel %vm29, %v416, %v418
    %v420 = vmul.f32 %v419, %v353
    %422 = vrot.lane.b32.xlu0 %v419, 64
    %v423 = vpop.permute.xlu0 %422
    %v425 = vmul.f32 %v419, %v423
    %427 = vrot.lane.b32.xlu0 %v425, 32
    %v428 = vpop.permute.xlu0 %427
    %v430 = vadd.f32 %v420, %v428
    %v431 = vtanh.pop %v430
    %433 = vrot.lane.b32.xlu0 %v431, 64
    %v434 = vpop.permute.xlu0 %433
    %v436 = vmul.f32 %v419, %v434
    %438 = vrot.lane.b32.xlu0 %v436, 32
    %v439 = vpop.permute.xlu0 %438
    %s441 = scalar_lea.vmem [#allocation2], 4
    %442 = vst.msk [vmem:[%s441] sm:$0x3] %vm287, %v439
    %s443 = scalar_lea.vmem %s4, 6
    %v444 = vld [vmem:[%s443] sm:$0x3]
    %v445 = vpack.c.bf16 %v436, %v436
    %447 = vrot.lane.b32.xlu0 %v445, 32
    %v448 = vpop.permute.xlu0 %447
    %v450 = vsel %vm136, %v448, 0
    %452 = vmatprep.subr.bf16.mxu0 0
    %453 = vmatpush1.bf16.msra.mxu0 %v214
    %454 = vmatprep.subr.bf16.mxu0 0
    %455 = vmatpush1.bf16.msra.mxu0 %v215
    %456 = vmatprep.subr.bf16.mxu0 0
    %457 = vmatpush1.bf16.msra.mxu0 0
    %458 = vmatprep.subr.bf16.mxu0 0
    %459 = vmatpush1.bf16.msra.mxu0 0
    %460 = vmatprep.subr.bf16.mxu0 0
    %461 = vmatpush1.bf16.msra.mxu0 0
    %462 = vmatprep.subr.bf16.mxu0 0
    %463 = vmatpush1.bf16.msra.mxu0 0
    %464 = vmatprep.subr.bf16.mxu0 0
    %465 = vmatpush1.bf16.msra.mxu0 0
    %466 = vmatprep.subr.bf16.mxu0 0
    %467 = vmatpush1.bf16.msra.mxu0 0
    %468 = vmatprep.subr.bf16.mxu0 0
    %469 = vmatpush1.bf16.msra.mxu0 0
    %470 = vmatprep.subr.bf16.mxu0 0
    %471 = vmatpush1.bf16.msra.mxu0 0
    %472 = vmatprep.subr.bf16.mxu0 0
    %473 = vmatpush1.bf16.msra.mxu0 0
    %474 = vmatprep.subr.bf16.mxu0 0
    %475 = vmatpush1.bf16.msra.mxu0 0
    %476 = vmatprep.subr.bf16.mxu0 0
    %477 = vmatpush1.bf16.msra.mxu0 0
    %478 = vmatprep.subr.bf16.mxu0 0
    %479 = vmatpush1.bf16.msra.mxu0 0
    %480 = vmatprep.subr.bf16.mxu0 0
    %481 = vmatpush1.bf16.msra.mxu0 0
    %482 = vmatprep.subr.bf16.mxu0 0
    %483 = vmatpush1.bf16.msra.mxu0 0
    %484 = vmatprep.mubr.bf16.mxu0 0
    %485 = vmatmul.mubr.bf16.gmra.mrb[0].mxu0 %v450
    %v486 = vpop.f32.mrb[0].mxu0
    %v487 = vadd.f32 0.0, %v486
    %v488 = vpop.f32.mrb[0].mxu0
    %v489 = vpop.f32.mrb[0].mxu0
    %v490 = vpop.f32.mrb[0].mxu0
    %491 = vdwg.mxu0
    %v492 = vadd.f32 %v444, %v487
    %v493 = vtanh.pop %v492
    %v494 = vmul.f32 %v493, 0.5
    %v495 = vadd.f32 %v494, 0.5
    %v496 = vsel %vm29, %v493, %v495
    %v497 = vmul.f32 %v496, %v430
    %499 = vrot.lane.b32.xlu0 %v496, 64
    %v500 = vpop.permute.xlu0 %499
    %v502 = vmul.f32 %v496, %v500
    %504 = vrot.lane.b32.xlu0 %v502, 32
    %v505 = vpop.permute.xlu0 %504
    %v507 = vadd.f32 %v497, %v505
    %v508 = vtanh.pop %v507
    %510 = vrot.lane.b32.xlu0 %v508, 64
    %v511 = vpop.permute.xlu0 %510
    %v513 = vmul.f32 %v496, %v511
    %515 = vrot.lane.b32.xlu0 %v513, 32
    %v516 = vpop.permute.xlu0 %515
    %s518 = scalar_lea.vmem [#allocation2], 6
    %519 = vst.msk [vmem:[%s518] sm:$0x3] %vm287, %v516
    %s520 = scalar_lea.vmem %s4, 8
    %v521 = vld [vmem:[%s520] sm:$0x3]
    %v522 = vpack.c.bf16 %v513, %v513
    %524 = vrot.lane.b32.xlu0 %v522, 32
    %v525 = vpop.permute.xlu0 %524
    %v527 = vsel %vm136, %v525, 0
    %529 = vmatprep.subr.bf16.mxu0 0
    %530 = vmatpush1.bf16.msra.mxu0 %v214
    %531 = vmatprep.subr.bf16.mxu0 0
    %532 = vmatpush1.bf16.msra.mxu0 %v215
    %533 = vmatprep.subr.bf16.mxu0 0
    %534 = vmatpush1.bf16.msra.mxu0 0
    %535 = vmatprep.subr.bf16.mxu0 0
    %536 = vmatpush1.bf16.msra.mxu0 0
    %537 = vmatprep.subr.bf16.mxu0 0
    %538 = vmatpush1.bf16.msra.mxu0 0
    %539 = vmatprep.subr.bf16.mxu0 0
    %540 = vmatpush1.bf16.msra.mxu0 0
    %541 = vmatprep.subr.bf16.mxu0 0
    %542 = vmatpush1.bf16.msra.mxu0 0
    %543 = vmatprep.subr.bf16.mxu0 0
    %544 = vmatpush1.bf16.msra.mxu0 0
    %545 = vmatprep.subr.bf16.mxu0 0
    %546 = vmatpush1.bf16.msra.mxu0 0
    %547 = vmatprep.subr.bf16.mxu0 0
    %548 = vmatpush1.bf16.msra.mxu0 0
    %549 = vmatprep.subr.bf16.mxu0 0
    %550 = vmatpush1.bf16.msra.mxu0 0
    %551 = vmatprep.subr.bf16.mxu0 0
    %552 = vmatpush1.bf16.msra.mxu0 0
    %553 = vmatprep.subr.bf16.mxu0 0
    %554 = vmatpush1.bf16.msra.mxu0 0
    %555 = vmatprep.subr.bf16.mxu0 0
    %556 = vmatpush1.bf16.msra.mxu0 0
    %557 = vmatprep.subr.bf16.mxu0 0
    %558 = vmatpush1.bf16.msra.mxu0 0
    %559 = vmatprep.subr.bf16.mxu0 0
    %560 = vmatpush1.bf16.msra.mxu0 0
    %561 = vmatprep.mubr.bf16.mxu0 0
    %562 = vmatmul.mubr.bf16.gmra.mrb[0].mxu0 %v527
    %v563 = vpop.f32.mrb[0].mxu0
    %v564 = vadd.f32 0.0, %v563
    %v565 = vpop.f32.mrb[0].mxu0
    %v566 = vpop.f32.mrb[0].mxu0
    %v567 = vpop.f32.mrb[0].mxu0
    %568 = vdwg.mxu0
    %v569 = vadd.f32 %v521, %v564
    %v570 = vtanh.pop %v569
    %v571 = vmul.f32 %v570, 0.5
    %v572 = vadd.f32 %v571, 0.5
    %v573 = vsel %vm29, %v570, %v572
    %v574 = vmul.f32 %v573, %v507
    %576 = vrot.lane.b32.xlu0 %v573, 64
    %v577 = vpop.permute.xlu0 %576
    %v579 = vmul.f32 %v573, %v577
    %581 = vrot.lane.b32.xlu0 %v579, 32
    %v582 = vpop.permute.xlu0 %581
    %v584 = vadd.f32 %v574, %v582
    %v585 = vtanh.pop %v584
    %587 = vrot.lane.b32.xlu0 %v585, 64
    %v588 = vpop.permute.xlu0 %587
    %v590 = vmul.f32 %v573, %v588
    %592 = vrot.lane.b32.xlu0 %v590, 32
    %v593 = vpop.permute.xlu0 %592
    %s595 = scalar_lea.vmem [#allocation2], 8
    %596 = vst.msk [vmem:[%s595] sm:$0x3] %vm287, %v593
    %s597 = scalar_lea.vmem %s4, 10
    %v598 = vld [vmem:[%s597] sm:$0x3]
    %v599 = vpack.c.bf16 %v590, %v590
    %601 = vrot.lane.b32.xlu0 %v599, 32
    %v602 = vpop.permute.xlu0 %601
    %v604 = vsel %vm136, %v602, 0
    %606 = vmatprep.subr.bf16.mxu0 0
    %607 = vmatpush1.bf16.msra.mxu0 %v214
    %608 = vmatprep.subr.bf16.mxu0 0
    %609 = vmatpush1.bf16.msra.mxu0 %v215
    %610 = vmatprep.subr.bf16.mxu0 0
    %611 = vmatpush1.bf16.msra.mxu0 0
    %612 = vmatprep.subr.bf16.mxu0 0
    %613 = vmatpush1.bf16.msra.mxu0 0
    %614 = vmatprep.subr.bf16.mxu0 0
    %615 = vmatpush1.bf16.msra.mxu0 0
    %616 = vmatprep.subr.bf16.mxu0 0
    %617 = vmatpush1.bf16.msra.mxu0 0
    %618 = vmatprep.subr.bf16.mxu0 0
    %619 = vmatpush1.bf16.msra.mxu0 0
    %620 = vmatprep.subr.bf16.mxu0 0
    %621 = vmatpush1.bf16.msra.mxu0 0
    %622 = vmatprep.subr.bf16.mxu0 0
    %623 = vmatpush1.bf16.msra.mxu0 0
    %624 = vmatprep.subr.bf16.mxu0 0
    %625 = vmatpush1.bf16.msra.mxu0 0
    %626 = vmatprep.subr.bf16.mxu0 0
    %627 = vmatpush1.bf16.msra.mxu0 0
    %628 = vmatprep.subr.bf16.mxu0 0
    %629 = vmatpush1.bf16.msra.mxu0 0
    %630 = vmatprep.subr.bf16.mxu0 0
    %631 = vmatpush1.bf16.msra.mxu0 0
    %632 = vmatprep.subr.bf16.mxu0 0
    %633 = vmatpush1.bf16.msra.mxu0 0
    %634 = vmatprep.subr.bf16.mxu0 0
    %635 = vmatpush1.bf16.msra.mxu0 0
    %636 = vmatprep.subr.bf16.mxu0 0
    %637 = vmatpush1.bf16.msra.mxu0 0
    %638 = vmatprep.mubr.bf16.mxu0 0
    %639 = vmatmul.mubr.bf16.gmra.mrb[0].mxu0 %v604
    %v640 = vpop.f32.mrb[0].mxu0
    %v641 = vadd.f32 0.0, %v640
    %v642 = vpop.f32.mrb[0].mxu0
    %v643 = vpop.f32.mrb[0].mxu0
    %v644 = vpop.f32.mrb[0].mxu0
    %645 = vdwg.mxu0
    %v646 = vadd.f32 %v598, %v641
    %v647 = vtanh.pop %v646
    %v648 = vmul.f32 %v647, 0.5
    %v649 = vadd.f32 %v648, 0.5
    %v650 = vsel %vm29, %v647, %v649
    %v651 = vmul.f32 %v650, %v584
    %653 = vrot.lane.b32.xlu0 %v650, 64
    %v654 = vpop.permute.xlu0 %653
    %v656 = vmul.f32 %v650, %v654
    %658 = vrot.lane.b32.xlu0 %v656, 32
    %v659 = vpop.permute.xlu0 %658
    %v661 = vadd.f32 %v651, %v659
    %v662 = vtanh.pop %v661
    %664 = vrot.lane.b32.xlu0 %v662, 64
    %v665 = vpop.permute.xlu0 %664
    %v667 = vmul.f32 %v650, %v665
    %669 = vrot.lane.b32.xlu0 %v667, 32
    %v670 = vpop.permute.xlu0 %669
    %s672 = scalar_lea.vmem [#allocation2], 10
    %673 = vst.msk [vmem:[%s672] sm:$0x3] %vm287, %v670
    %s674 = scalar_lea.vmem %s4, 12
    %v675 = vld [vmem:[%s674] sm:$0x3]
    %v676 = vpack.c.bf16 %v667, %v667
    %678 = vrot.lane.b32.xlu0 %v676, 32
    %v679 = vpop.permute.xlu0 %678
    %v681 = vsel %vm136, %v679, 0
    %683 = vmatprep.subr.bf16.mxu0 0
    %684 = vmatpush1.bf16.msra.mxu0 %v214
    %685 = vmatprep.subr.bf16.mxu0 0
    %686 = vmatpush1.bf16.msra.mxu0 %v215
    %687 = vmatprep.subr.bf16.mxu0 0
    %688 = vmatpush1.bf16.msra.mxu0 0
    %689 = vmatprep.subr.bf16.mxu0 0
    %690 = vmatpush1.bf16.msra.mxu0 0
    %691 = vmatprep.subr.bf16.mxu0 0
    %692 = vmatpush1.bf16.msra.mxu0 0
    %693 = vmatprep.subr.bf16.mxu0 0
    %694 = vmatpush1.bf16.msra.mxu0 0
    %695 = vmatprep.subr.bf16.mxu0 0
    %696 = vmatpush1.bf16.msra.mxu0 0
    %697 = vmatprep.subr.bf16.mxu0 0
    %698 = vmatpush1.bf16.msra.mxu0 0
    %699 = vmatprep.subr.bf16.mxu0 0
    %700 = vmatpush1.bf16.msra.mxu0 0
    %701 = vmatprep.subr.bf16.mxu0 0
    %702 = vmatpush1.bf16.msra.mxu0 0
    %703 = vmatprep.subr.bf16.mxu0 0
    %704 = vmatpush1.bf16.msra.mxu0 0
    %705 = vmatprep.subr.bf16.mxu0 0
    %706 = vmatpush1.bf16.msra.mxu0 0
    %707 = vmatprep.subr.bf16.mxu0 0
    %708 = vmatpush1.bf16.msra.mxu0 0
    %709 = vmatprep.subr.bf16.mxu0 0
    %710 = vmatpush1.bf16.msra.mxu0 0
    %711 = vmatprep.subr.bf16.mxu0 0
    %712 = vmatpush1.bf16.msra.mxu0 0
    %713 = vmatprep.subr.bf16.mxu0 0
    %714 = vmatpush1.bf16.msra.mxu0 0
    %715 = vmatprep.mubr.bf16.mxu0 0
    %716 = vmatmul.mubr.bf16.gmra.mrb[0].mxu0 %v681
    %v717 = vpop.f32.mrb[0].mxu0
    %v718 = vadd.f32 0.0, %v717
    %v719 = vpop.f32.mrb[0].mxu0
    %v720 = vpop.f32.mrb[0].mxu0
    %v721 = vpop.f32.mrb[0].mxu0
    %722 = vdwg.mxu0
    %v723 = vadd.f32 %v675, %v718
    %v724 = vtanh.pop %v723
    %v725 = vmul.f32 %v724, 0.5
    %v726 = vadd.f32 %v725, 0.5
    %v727 = vsel %vm29, %v724, %v726
    %v728 = vmul.f32 %v727, %v661
    %730 = vrot.lane.b32.xlu0 %v727, 64
    %v731 = vpop.permute.xlu0 %730
    %v733 = vmul.f32 %v727, %v731
    %735 = vrot.lane.b32.xlu0 %v733, 32
    %v736 = vpop.permute.xlu0 %735
    %v738 = vadd.f32 %v728, %v736
    %v739 = vtanh.pop %v738
    %741 = vrot.lane.b32.xlu0 %v739, 64
    %v742 = vpop.permute.xlu0 %741
    %v744 = vmul.f32 %v727, %v742
    %746 = vrot.lane.b32.xlu0 %v744, 32
    %v747 = vpop.permute.xlu0 %746
    %s749 = scalar_lea.vmem [#allocation2], 12
    %750 = vst.msk [vmem:[%s749] sm:$0x3] %vm287, %v747
    // Predicated region
    $region26: #{tpu_custom_call.1} parent=1 // pred_check
      _
    $region27: #{tpu_custom_call.1} parent=1 // pred_check_branch
      %752 = sbr.rel (0) target = $region29
    $region28: #{tpu_custom_call.1} parent=1 // pred_region
      %s754 = ssub.s32 224, 224
      %755 = vsyncadd [#allocation3], %s754
      %s756 = sshll.u32 [#allocation2], 4
      %s757 = int_to_ptr.vmem [resolvable:$true] %s756
      %762 = dma.vmem_to_hbm [thread:$0]  %s757, 224, %s6, [#allocation3], 32, 32, 2
    $region29: #{tpu_custom_call.1} parent=1 // pred_fallthru
      _
    // Predicated region
    $region30: #{tpu_custom_call.1} parent=1 // pred_check
      _
    $region31: #{tpu_custom_call.1} parent=1 // pred_check_branch
      %764 = sbr.rel (0) target = $region33
    $region32: #{tpu_custom_call.1} parent=1 // pred_region
      %765 = dma.done [#allocation3], 224
    $region33: #{tpu_custom_call.1} parent=1 // pred_fallthru
      _
    %766 = vsyncpa [#allocation3], 1

</llo_original>
